<compile_context>
chip_gen: v7x
topology: tpu7x:2x2x1
jax: 0.10.0
libtpu: 0.0.40
codegen_flags: <defaults>
</compile_context>

<pallas_src>
import functools

import jax
import jax.numpy as jnp
from jax.experimental import pallas as pl
from jax.experimental.pallas import tpu as pltpu

# ---------------------------------------------------------------------------
# Configuration
# ---------------------------------------------------------------------------
IN_CH = 4
OUT_CH = 4
K = 3
STRIDE = 1          # only stride=1 implemented (this config keeps the skip branch)
PAD = 1
GROUPS = 1
NUM_CONV_BRANCHES = 2
BN_EPS = 1e-5


# ---------------------------------------------------------------------------
# Pallas kernel: fused 3x3 conv (stride 1) + bias + ReLU for the WHOLE batch in
# one grid step.  Spatial dim H*W sits lane-dense; taps come from pltpu.roll of
# the in-register image, masked with a precomputed boundary table.
# ---------------------------------------------------------------------------
def _mobileone_conv_kernel(x_ref, w_ref, m_ref, o_ref, *, N, H, W, Cin, Cout, k):
    # x_ref: (N, Cin, H*W)          flat NCHW images (VMEM)
    # w_ref: (Cout, k*k*Cin + 1)    fused, im2col-ordered weight with bias column
    # m_ref: (k*k, H*W)             precomputed boundary-validity masks (0.0 / 1.0)
    # o_ref: (N, Cout, H*W)         output, lane-dense on H*W
    HW = H * W
    pad = k // 2

    wv = w_ref[...]                          # (Cout, k*k*Cin + 1), hoisted
    mv = m_ref[...]                          # (k*k, HW), hoisted
    ones_row = jnp.ones((1, HW), jnp.float32)  # bias row of the im2col patch

    for n in range(N):                       # N is small & static -> unrolled
        xn = x_ref[n]                        # (Cin, HW)
        taps = []
        for dh in range(k):
            for dw in range(k):
                t = dh * k + dw
                delta = (dh - pad) * W + (dw - pad)
                shift = (-delta) % HW        # out[p] = xn[(p + delta) % HW]
                if shift != 0:
                    shifted = pltpu.roll(xn, shift=shift, axis=1)
                else:
                    shifted = xn
                if dh == pad and dw == pad:  # center tap: mask is all ones
                    taps.append(shifted)
                else:
                    # wrapped / out-of-image lanes -> 0 (zero-padding semantics)
                    taps.append(shifted * mv[t:t + 1, :])
        # Register-resident im2col patch: (k*k*Cin + 1, HW), ones row last.
        patch = jnp.concatenate(taps + [ones_row], axis=0)
        # One MXU matmul per image (bias folded in): (Cout, 37) x (37, HW).
        acc = jnp.dot(wv, patch, preferred_element_type=jnp.float32)
        o_ref[n] = jnp.maximum(acc, 0.0).astype(o_ref.dtype)   # ReLU (use_act=True)


def _boundary_masks(H, W, k=K):
    """(k*k, H*W) f32 table: mask[t, p] = 1 iff tap t of output pixel p is in-image."""
    pad = k // 2
    pix = jnp.arange(H * W, dtype=jnp.int32)
    row = pix // W
    col = pix % W
    masks = []
    for dh in range(k):
        for dw in range(k):
            rv = row + (dh - pad)
            cv = col + (dw - pad)
            valid = (rv >= 0) & (rv < H) & (cv >= 0) & (cv < W)
            masks.append(valid.astype(jnp.float32))
    return jnp.stack(masks, axis=0)


def mobileone_block_pallas(x_nchw, w2d, bias):
    """x_nchw: (N, Cin, H, W) f32.  w2d: (Cout, K*K*Cin).  Returns (N, Cout, H, W)."""
    N, Cin, H, W = x_nchw.shape
    Cout = w2d.shape[0]
    HW = H * W
    kk1 = K * K * Cin + 1

    x_flat = x_nchw.reshape(N, Cin, HW)                     # free reshape (contiguous)
    w_aug = jnp.concatenate([w2d, bias.reshape(Cout, 1)], axis=1)   # bias column
    masks = _boundary_masks(H, W)

    kernel = functools.partial(
        _mobileone_conv_kernel, N=N, H=H, W=W, Cin=Cin, Cout=Cout, k=K
    )

    cost = pl.CostEstimate(
        flops=2 * N * Cout * kk1 * HW,
        transcendentals=0,
        bytes_accessed=4 * (N * Cin * HW + Cout * kk1 + K * K * HW + N * Cout * HW),
    )

    # TODO(synk): for large N, tile the batch axis (several images per grid step)
    # instead of unrolling the whole batch in one block.
    out_flat = pl.pallas_call(
        kernel,
        out_shape=jax.ShapeDtypeStruct((N, Cout, HW), jnp.float32),
        grid_spec=pltpu.PrefetchScalarGridSpec(
            num_scalar_prefetch=0,
            grid=(1,),                                       # single step: whole batch
            in_specs=[
                pl.BlockSpec((N, Cin, HW), lambda i: (0, 0, 0)),
                pl.BlockSpec((Cout, kk1), lambda i: (0, 0)),
                pl.BlockSpec((K * K, HW), lambda i: (0, 0)),
            ],
            out_specs=pl.BlockSpec((N, Cout, HW), lambda i: (0, 0, 0)),
        ),
        compiler_params=pltpu.CompilerParams(
            dimension_semantics=("arbitrary",),
        ),
        cost_estimate=cost,
    )(x_flat, w_aug, masks)

    return out_flat.reshape(N, Cout, H, W)                  # free reshape, no transpose


# ---------------------------------------------------------------------------
# Parameter construction + BN fusion (plain-JAX glue, mirrors _get_kernel_bias)
# ---------------------------------------------------------------------------
def _fuse_conv_bn(w_oihw, gamma, beta, mean, var, eps=BN_EPS):
    std = jnp.sqrt(var + eps)
    t = (gamma / std).reshape(-1, 1, 1, 1)
    return w_oihw * t, beta - mean * gamma / std


def build_fused_params(key):
    keys = iter(jax.random.split(key, 32))

    def rnd(shape, lo=-0.5, hi=0.5):
        return jax.random.uniform(next(keys), shape, jnp.float32, lo, hi)

    kernel_sum = jnp.zeros((OUT_CH, IN_CH, K, K), jnp.float32)
    bias_sum = jnp.zeros((OUT_CH,), jnp.float32)

    # rbr_conv branches: conv3x3 (no bias) + BN
    for _ in range(NUM_CONV_BRANCHES):
        w = rnd((OUT_CH, IN_CH, K, K))
        gamma = rnd((OUT_CH,), 0.5, 1.5)
        beta = rnd((OUT_CH,))
        mean = rnd((OUT_CH,))
        var = rnd((OUT_CH,), 0.5, 1.5)
        kw, kb = _fuse_conv_bn(w, gamma, beta, mean, var)
        kernel_sum = kernel_sum + kw
        bias_sum = bias_sum + kb

    # rbr_scale branch: conv1x1 (no bias) + BN, padded to 3x3 center
    w1 = rnd((OUT_CH, IN_CH, 1, 1))
    gamma = rnd((OUT_CH,), 0.5, 1.5)
    beta = rnd((OUT_CH,))
    mean = rnd((OUT_CH,))
    var = rnd((OUT_CH,), 0.5, 1.5)
    kw, kb = _fuse_conv_bn(w1, gamma, beta, mean, var)
    kw = jnp.pad(kw, ((0, 0), (0, 0), (K // 2, K // 2), (K // 2, K // 2)))
    kernel_sum = kernel_sum + kw
    bias_sum = bias_sum + kb

    # rbr_skip branch (out_channels == in_channels, stride == 1): BatchNorm2d
    gamma = rnd((OUT_CH,), 0.5, 1.5)
    beta = rnd((OUT_CH,))
    mean = rnd((OUT_CH,))
    var = rnd((OUT_CH,), 0.5, 1.5)
    id_k = jnp.zeros((IN_CH, IN_CH, K, K), jnp.float32)
    id_k = id_k.at[jnp.arange(IN_CH), jnp.arange(IN_CH), K // 2, K // 2].set(1.0)
    kw, kb = _fuse_conv_bn(id_k, gamma, beta, mean, var)
    kernel_sum = kernel_sum + kw
    bias_sum = bias_sum + kb

    # OIHW -> (Cout, K*K*Cin), column index = (dh*K + dw)*Cin + c  (im2col order)
    w2d = jnp.transpose(kernel_sum, (0, 2, 3, 1)).reshape(OUT_CH, K * K * IN_CH)
    return w2d, bias_sum, kernel_sum


# ---------------------------------------------------------------------------
# Reference (plain JAX/XLA conv) used for a silent correctness check.
# ---------------------------------------------------------------------------
def reference(x_nchw, kernel_oihw, bias):
    out = jax.lax.conv_general_dilated(
        x_nchw, kernel_oihw, window_strides=(STRIDE, STRIDE),
        padding=((PAD, PAD), (PAD, PAD)),
        dimension_numbers=("NCHW", "OIHW", "NCHW"),
    )
    out = out + bias.reshape(1, -1, 1, 1)
    return jnp.maximum(out, 0.0)


# TODO(synk): grouped conv (groups > 1), stride > 1 and the SqueezeExcitation
# branch are not exercised by this configuration and are not implemented.

if __name__ == "__main__":
    key = jax.random.PRNGKey(0)
    k_x, k_p = jax.random.split(key)

    N, H, W = 2, 16, 16
    x = jax.random.normal(k_x, (N, IN_CH, H, W), jnp.float32)

    w2d, bias, kernel_oihw = build_fused_params(k_p)

    out = mobileone_block_pallas(x, w2d, bias)
    out = jax.block_until_ready(out)

    ref = jax.block_until_ready(reference(x, kernel_oihw, bias))
    assert out.shape == (N, OUT_CH, H, W)
    assert jnp.allclose(out, ref, atol=1e-4, rtol=1e-4)

    print("KERNEL_OK")
</pallas_src>

<mosaic_0001>
module attributes {stable_mosaic.version = 11 : i64} {
  func.func @_mobileone_conv_kernel(%arg0: i32, %arg1: memref<2x4x256xf32, #tpu.memory_space<vmem>>, %arg2: memref<4x37xf32, #tpu.memory_space<vmem>>, %arg3: memref<9x256xf32, #tpu.memory_space<vmem>>, %arg4: memref<2x4x256xf32, #tpu.memory_space<vmem>>) attributes {dimension_semantics = [#tpu.dimension_semantics<arbitrary>], iteration_bounds = array<i64: 1>, scalar_prefetch = 0 : i64, scratch_operands = 0 : i64, tpu.core_type = #tpu.core_type<tc>, window_params = [{pipeline_mode = #tpu.pipeline_mode<synchronous>, transform_indices = @transform_0, window_bounds = array<i64: 2, 4, 256>}, {pipeline_mode = #tpu.pipeline_mode<synchronous>, transform_indices = @transform_1, window_bounds = array<i64: 4, 37>}, {pipeline_mode = #tpu.pipeline_mode<synchronous>, transform_indices = @transform_2, window_bounds = array<i64: 9, 256>}, {pipeline_mode = #tpu.pipeline_mode<synchronous>, transform_indices = @transform_3, window_bounds = array<i64: 2, 4, 256>}]} {
    %c0 = arith.constant 0 : index
    %c0_0 = arith.constant 0 : index
    %0 = vector.load %arg2[%c0, %c0_0] : memref<4x37xf32, #tpu.memory_space<vmem>>, vector<4x37xf32>
    %c0_1 = arith.constant 0 : index
    %c0_2 = arith.constant 0 : index
    %1 = vector.load %arg3[%c0_1, %c0_2] : memref<9x256xf32, #tpu.memory_space<vmem>>, vector<9x256xf32>
    %cst = arith.constant 1.000000e+00 : f32
    %2 = vector.broadcast %cst : f32 to vector<1x256xf32>
    %c0_3 = arith.constant 0 : index
    %c0_4 = arith.constant 0 : index
    %c0_5 = arith.constant 0 : index
    %3 = vector.load %arg1[%c0_3, %c0_4, %c0_5] : memref<2x4x256xf32, #tpu.memory_space<vmem>>, vector<1x4x256xf32>
    %4 = vector.shape_cast %3 : vector<1x4x256xf32> to vector<4x256xf32>
    %c17_i32 = arith.constant 17 : i32
    %5 = tpu.dynamic_rotate %4 by %c17_i32 dim 1 : vector<4x256xf32>, i32 -> vector<4x256xf32>
    %6 = vector.extract_strided_slice %1 {offsets = [0, 0], sizes = [1, 256], strides = [1, 1]} : vector<9x256xf32> to vector<1x256xf32>
    %7 = vector.broadcast %6 : vector<1x256xf32> to vector<4x256xf32>
    %8 = arith.mulf %5, %7 : vector<4x256xf32>
    %c16_i32 = arith.constant 16 : i32
    %9 = tpu.dynamic_rotate %4 by %c16_i32 dim 1 : vector<4x256xf32>, i32 -> vector<4x256xf32>
    %10 = vector.extract_strided_slice %1 {offsets = [1, 0], sizes = [1, 256], strides = [1, 1]} : vector<9x256xf32> to vector<1x256xf32>
    %11 = vector.broadcast %10 : vector<1x256xf32> to vector<4x256xf32>
    %12 = arith.mulf %9, %11 : vector<4x256xf32>
    %c15_i32 = arith.constant 15 : i32
    %13 = tpu.dynamic_rotate %4 by %c15_i32 dim 1 : vector<4x256xf32>, i32 -> vector<4x256xf32>
    %14 = vector.extract_strided_slice %1 {offsets = [2, 0], sizes = [1, 256], strides = [1, 1]} : vector<9x256xf32> to vector<1x256xf32>
    %15 = vector.broadcast %14 : vector<1x256xf32> to vector<4x256xf32>
    %16 = arith.mulf %13, %15 : vector<4x256xf32>
    %c1_i32 = arith.constant 1 : i32
    %17 = tpu.dynamic_rotate %4 by %c1_i32 dim 1 : vector<4x256xf32>, i32 -> vector<4x256xf32>
    %18 = vector.extract_strided_slice %1 {offsets = [3, 0], sizes = [1, 256], strides = [1, 1]} : vector<9x256xf32> to vector<1x256xf32>
    %19 = vector.broadcast %18 : vector<1x256xf32> to vector<4x256xf32>
    %20 = arith.mulf %17, %19 : vector<4x256xf32>
    %c255_i32 = arith.constant 255 : i32
    %21 = tpu.dynamic_rotate %4 by %c255_i32 dim 1 : vector<4x256xf32>, i32 -> vector<4x256xf32>
    %22 = vector.extract_strided_slice %1 {offsets = [5, 0], sizes = [1, 256], strides = [1, 1]} : vector<9x256xf32> to vector<1x256xf32>
    %23 = vector.broadcast %22 : vector<1x256xf32> to vector<4x256xf32>
    %24 = arith.mulf %21, %23 : vector<4x256xf32>
    %c241_i32 = arith.constant 241 : i32
    %25 = tpu.dynamic_rotate %4 by %c241_i32 dim 1 : vector<4x256xf32>, i32 -> vector<4x256xf32>
    %26 = vector.extract_strided_slice %1 {offsets = [6, 0], sizes = [1, 256], strides = [1, 1]} : vector<9x256xf32> to vector<1x256xf32>
    %27 = vector.broadcast %26 : vector<1x256xf32> to vector<4x256xf32>
    %28 = arith.mulf %25, %27 : vector<4x256xf32>
    %c240_i32 = arith.constant 240 : i32
    %29 = tpu.dynamic_rotate %4 by %c240_i32 dim 1 : vector<4x256xf32>, i32 -> vector<4x256xf32>
    %30 = vector.extract_strided_slice %1 {offsets = [7, 0], sizes = [1, 256], strides = [1, 1]} : vector<9x256xf32> to vector<1x256xf32>
    %31 = vector.broadcast %30 : vector<1x256xf32> to vector<4x256xf32>
    %32 = arith.mulf %29, %31 : vector<4x256xf32>
    %c239_i32 = arith.constant 239 : i32
    %33 = tpu.dynamic_rotate %4 by %c239_i32 dim 1 : vector<4x256xf32>, i32 -> vector<4x256xf32>
    %34 = vector.extract_strided_slice %1 {offsets = [8, 0], sizes = [1, 256], strides = [1, 1]} : vector<9x256xf32> to vector<1x256xf32>
    %35 = vector.broadcast %34 : vector<1x256xf32> to vector<4x256xf32>
    %36 = arith.mulf %33, %35 : vector<4x256xf32>
    %37 = tpu.concatenate %8, %12, %16, %20, %4, %24, %28, %32, %36, %2 in 0 : vector<4x256xf32>, vector<4x256xf32>, vector<4x256xf32>, vector<4x256xf32>, vector<4x256xf32>, vector<4x256xf32>, vector<4x256xf32>, vector<4x256xf32>, vector<4x256xf32>, vector<1x256xf32> -> vector<37x256xf32>
    %cst_6 = arith.constant dense<0.000000e+00> : vector<4x256xf32>
    %38 = tpu.matmul %0, %37, %cst_6 {dimension_numbers = #tpu.dot_dimension_numbers<[1], [0], [0], [1], [0, 0, 1, 1], [], []>} : vector<4x37xf32>, vector<37x256xf32>, vector<4x256xf32> -> vector<4x256xf32>
    %cst_7 = arith.constant 0.000000e+00 : f32
    %39 = vector.broadcast %cst_7 : f32 to vector<4x256xf32>
    %40 = arith.maximumf %38, %39 : vector<4x256xf32>
    %c0_8 = arith.constant 0 : index
    %c0_9 = arith.constant 0 : index
    %c0_10 = arith.constant 0 : index
    %41 = vector.load %arg4[%c0_8, %c0_9, %c0_10] : memref<2x4x256xf32, #tpu.memory_space<vmem>>, vector<1x4x256xf32>
    %42 = vector.shape_cast %41 : vector<1x4x256xf32> to vector<4x256xf32>
    %43 = vector.shape_cast %40 : vector<4x256xf32> to vector<1x4x256xf32>
    tpu.vector_store %arg4[%c0_8, %c0_9, %c0_10], %43 {strides = array<i32>} : memref<2x4x256xf32, #tpu.memory_space<vmem>>, vector<1x4x256xf32>,
    %c1 = arith.constant 1 : index
    %c0_11 = arith.constant 0 : index
    %c0_12 = arith.constant 0 : index
    %44 = vector.load %arg1[%c1, %c0_11, %c0_12] : memref<2x4x256xf32, #tpu.memory_space<vmem>>, vector<1x4x256xf32>
    %45 = vector.shape_cast %44 : vector<1x4x256xf32> to vector<4x256xf32>
    %c17_i32_13 = arith.constant 17 : i32
    %46 = tpu.dynamic_rotate %45 by %c17_i32_13 dim 1 : vector<4x256xf32>, i32 -> vector<4x256xf32>
    %47 = vector.extract_strided_slice %1 {offsets = [0, 0], sizes = [1, 256], strides = [1, 1]} : vector<9x256xf32> to vector<1x256xf32>
    %48 = vector.broadcast %47 : vector<1x256xf32> to vector<4x256xf32>
    %49 = arith.mulf %46, %48 : vector<4x256xf32>
    %c16_i32_14 = arith.constant 16 : i32
    %50 = tpu.dynamic_rotate %45 by %c16_i32_14 dim 1 : vector<4x256xf32>, i32 -> vector<4x256xf32>
    %51 = vector.extract_strided_slice %1 {offsets = [1, 0], sizes = [1, 256], strides = [1, 1]} : vector<9x256xf32> to vector<1x256xf32>
    %52 = vector.broadcast %51 : vector<1x256xf32> to vector<4x256xf32>
    %53 = arith.mulf %50, %52 : vector<4x256xf32>
    %c15_i32_15 = arith.constant 15 : i32
    %54 = tpu.dynamic_rotate %45 by %c15_i32_15 dim 1 : vector<4x256xf32>, i32 -> vector<4x256xf32>
    %55 = vector.extract_strided_slice %1 {offsets = [2, 0], sizes = [1, 256], strides = [1, 1]} : vector<9x256xf32> to vector<1x256xf32>
    %56 = vector.broadcast %55 : vector<1x256xf32> to vector<4x256xf32>
    %57 = arith.mulf %54, %56 : vector<4x256xf32>
    %c1_i32_16 = arith.constant 1 : i32
    %58 = tpu.dynamic_rotate %45 by %c1_i32_16 dim 1 : vector<4x256xf32>, i32 -> vector<4x256xf32>
    %59 = vector.extract_strided_slice %1 {offsets = [3, 0], sizes = [1, 256], strides = [1, 1]} : vector<9x256xf32> to vector<1x256xf32>
    %60 = vector.broadcast %59 : vector<1x256xf32> to vector<4x256xf32>
    %61 = arith.mulf %58, %60 : vector<4x256xf32>
    %c255_i32_17 = arith.constant 255 : i32
    %62 = tpu.dynamic_rotate %45 by %c255_i32_17 dim 1 : vector<4x256xf32>, i32 -> vector<4x256xf32>
    %63 = vector.extract_strided_slice %1 {offsets = [5, 0], sizes = [1, 256], strides = [1, 1]} : vector<9x256xf32> to vector<1x256xf32>
    %64 = vector.broadcast %63 : vector<1x256xf32> to vector<4x256xf32>
    %65 = arith.mulf %62, %64 : vector<4x256xf32>
    %c241_i32_18 = arith.constant 241 : i32
    %66 = tpu.dynamic_rotate %45 by %c241_i32_18 dim 1 : vector<4x256xf32>, i32 -> vector<4x256xf32>
    %67 = vector.extract_strided_slice %1 {offsets = [6, 0], sizes = [1, 256], strides = [1, 1]} : vector<9x256xf32> to vector<1x256xf32>
    %68 = vector.broadcast %67 : vector<1x256xf32> to vector<4x256xf32>
    %69 = arith.mulf %66, %68 : vector<4x256xf32>
    %c240_i32_19 = arith.constant 240 : i32
    %70 = tpu.dynamic_rotate %45 by %c240_i32_19 dim 1 : vector<4x256xf32>, i32 -> vector<4x256xf32>
    %71 = vector.extract_strided_slice %1 {offsets = [7, 0], sizes = [1, 256], strides = [1, 1]} : vector<9x256xf32> to vector<1x256xf32>
    %72 = vector.broadcast %71 : vector<1x256xf32> to vector<4x256xf32>
    %73 = arith.mulf %70, %72 : vector<4x256xf32>
    %c239_i32_20 = arith.constant 239 : i32
    %74 = tpu.dynamic_rotate %45 by %c239_i32_20 dim 1 : vector<4x256xf32>, i32 -> vector<4x256xf32>
    %75 = vector.extract_strided_slice %1 {offsets = [8, 0], sizes = [1, 256], strides = [1, 1]} : vector<9x256xf32> to vector<1x256xf32>
    %76 = vector.broadcast %75 : vector<1x256xf32> to vector<4x256xf32>
    %77 = arith.mulf %74, %76 : vector<4x256xf32>
    %78 = tpu.concatenate %49, %53, %57, %61, %45, %65, %69, %73, %77, %2 in 0 : vector<4x256xf32>, vector<4x256xf32>, vector<4x256xf32>, vector<4x256xf32>, vector<4x256xf32>, vector<4x256xf32>, vector<4x256xf32>, vector<4x256xf32>, vector<4x256xf32>, vector<1x256xf32> -> vector<37x256xf32>
    %cst_21 = arith.constant dense<0.000000e+00> : vector<4x256xf32>
    %79 = tpu.matmul %0, %78, %cst_21 {dimension_numbers = #tpu.dot_dimension_numbers<[1], [0], [0], [1], [0, 0, 1, 1], [], []>} : vector<4x37xf32>, vector<37x256xf32>, vector<4x256xf32> -> vector<4x256xf32>
    %cst_22 = arith.constant 0.000000e+00 : f32
    %80 = vector.broadcast %cst_22 : f32 to vector<4x256xf32>
    %81 = arith.maximumf %79, %80 : vector<4x256xf32>
    %c1_23 = arith.constant 1 : index
    %c0_24 = arith.constant 0 : index
    %c0_25 = arith.constant 0 : index
    %82 = vector.load %arg4[%c1_23, %c0_24, %c0_25] : memref<2x4x256xf32, #tpu.memory_space<vmem>>, vector<1x4x256xf32>
    %83 = vector.shape_cast %82 : vector<1x4x256xf32> to vector<4x256xf32>
    %84 = vector.shape_cast %81 : vector<4x256xf32> to vector<1x4x256xf32>
    tpu.vector_store %arg4[%c1_23, %c0_24, %c0_25], %84 {strides = array<i32>} : memref<2x4x256xf32, #tpu.memory_space<vmem>>, vector<1x4x256xf32>,
    return
  }
  func.func @transform_0(%arg0: i32) -> (i32, i32, i32) {
    %c0_i32 = arith.constant 0 : i32
    %c0_i32_0 = arith.constant 0 : i32
    %c0_i32_1 = arith.constant 0 : i32
    %c0_i32_2 = arith.constant 0 : i32
    return %c0_i32, %c0_i32_0, %c0_i32_1 : i32, i32, i32
  }
  func.func @transform_1(%arg0: i32) -> (i32, i32) {
    %c0_i32 = arith.constant 0 : i32
    %c0_i32_0 = arith.constant 0 : i32
    %c0_i32_1 = arith.constant 0 : i32
    return %c0_i32, %c0_i32_0 : i32, i32
  }
  func.func @transform_2(%arg0: i32) -> (i32, i32) {
    %c0_i32 = arith.constant 0 : i32
    %c0_i32_0 = arith.constant 0 : i32
    %c0_i32_1 = arith.constant 0 : i32
    return %c0_i32, %c0_i32_0 : i32, i32
  }
  func.func @transform_3(%arg0: i32) -> (i32, i32, i32) {
    %c0_i32 = arith.constant 0 : i32
    %c0_i32_0 = arith.constant 0 : i32
    %c0_i32_1 = arith.constant 0 : i32
    %c0_i32_2 = arith.constant 0 : i32
    return %c0_i32, %c0_i32_0, %c0_i32_1 : i32, i32, i32
  }
}

</mosaic_0001>

<llo_original>
// kernel: tpu_custom_call.1
$region0: #{tpu_custom_call.1}
  #allocation0 [shape = 'u32[]', space=smem, size = 0x4, offset = 0x4, fixed_abs, tag = 'smem constant byte address 0x4 - core index']
  #allocation1 [shape = 'u32[144,128]{1,0:T(1,128)}', space=vmem, size = 0x12000, scoped, tag = 'internal scratch']
  %s0 = inlined_call_operand.hbm [shape: f32[2,4,256], index: 0, kind: input, shape index: {}]
  %s1 = inlined_call_operand.hbm [shape: f32[4,37], index: 1, kind: input, shape index: {}]
  %s2 = inlined_call_operand.hbm [shape: f32[9,256], index: 2, kind: input, shape index: {}]
  %s3 = inlined_call_operand.hbm [shape: f32[2,4,256], index: 3, kind: output, shape index: {}]
  %s4 = sld [smem:[#allocation0]]
  $region34: #{tpu_custom_call.1} parent=0
    _
  %s6 = ssub.s32 1, %s4
  %s7 = scalar_select 0, %s6, %s4
  $region1: #{tpu_custom_call.1} parent=0
    #allocation2 [shape = 'u8[8192]{0}', space=vmem, size = 0x2000, scoped, tag = 'input window, operand 0, single buffered']
    #allocation3 [shape = 's32[1]{0}', space=sflag, size = 0x4, scoped, tag = 'scoped memory for tpu_custom_call.1']
    #allocation4 [shape = 's32[1]{0}', space=sflag, size = 0x4, scoped, tag = 'scoped memory for tpu_custom_call.1']
    #allocation5 [shape = 'u8[2048]{0}', space=vmem, size = 0x800, scoped, tag = 'input window, operand 1, single buffered']
    #allocation6 [shape = 's32[1]{0}', space=sflag, size = 0x4, scoped, tag = 'scoped memory for tpu_custom_call.1']
    #allocation7 [shape = 'u8[16384]{0}', space=vmem, size = 0x4000, scoped, tag = 'input window, operand 2, single buffered']
    #allocation8 [shape = 'u8[8192]{0}', space=vmem, size = 0x2000, scoped, tag = 'output window, operand 0, single buffered']
    %8 = vsyncpa [#allocation3], 0
    %9 = vsyncpa [#allocation6], 0
    %10 = vsyncpa [#allocation4], 0
    // Predicated region
    $region2: #{tpu_custom_call.1} parent=1 // pred_check
      _
    $region3: #{tpu_custom_call.1} parent=1 // pred_check_branch
      %12 = sbr.rel (0) target = $region5
    $region4: #{tpu_custom_call.1} parent=1 // pred_region
      %s14 = ssub.s32 256, 256
      %15 = vsyncadd [#allocation3], %s14
      %s16 = sshll.u32 [#allocation2], 4
      %s17 = int_to_ptr.vmem [resolvable:$true] %s16
      %22 = dma.hbm_to_vmem [thread:$0]  %s0, 256, %s17, [#allocation3], 128, 128, 8
    $region5: #{tpu_custom_call.1} parent=1 // pred_fallthru
      _
    // Predicated region
    $region6: #{tpu_custom_call.1} parent=1 // pred_check
      _
    $region7: #{tpu_custom_call.1} parent=1 // pred_check_branch
      %24 = sbr.rel (0) target = $region9
    $region8: #{tpu_custom_call.1} parent=1 // pred_region
      %s26 = ssub.s32 64, 64
      %27 = vsyncadd [#allocation6], %s26
      %s29 = sshll.u32 [#allocation5], 4
      %s30 = int_to_ptr.vmem [resolvable:$true] %s29
      %32 = dma.hbm_to_vmem [thread:$0]  %s1, 64, %s30, [#allocation6]
    $region9: #{tpu_custom_call.1} parent=1 // pred_fallthru
      _
    // Predicated region
    $region10: #{tpu_custom_call.1} parent=1 // pred_check
      _
    $region11: #{tpu_custom_call.1} parent=1 // pred_check_branch
      %34 = sbr.rel (0) target = $region13
    $region12: #{tpu_custom_call.1} parent=1 // pred_region
      %s36 = ssub.s32 512, 512
      %37 = vsyncadd [#allocation6], %s36
      %s38 = sshll.u32 [#allocation7], 4
      %s39 = int_to_ptr.vmem [resolvable:$true] %s38
      %44 = dma.hbm_to_vmem [thread:$0]  %s2, 512, %s39, [#allocation6], 256, 256, 16
    $region13: #{tpu_custom_call.1} parent=1 // pred_fallthru
      _
    // Predicated region
    $region14: #{tpu_custom_call.1} parent=1 // pred_check
      _
    $region15: #{tpu_custom_call.1} parent=1 // pred_check_branch
      %46 = sbr.rel (0) target = $region17
    $region16: #{tpu_custom_call.1} parent=1 // pred_region
      %47 = dma.done [#allocation3], 256
    $region17: #{tpu_custom_call.1} parent=1 // pred_fallthru
      _
    // Predicated region
    $region18: #{tpu_custom_call.1} parent=1 // pred_check
      _
    $region19: #{tpu_custom_call.1} parent=1 // pred_check_branch
      %49 = sbr.rel (0) target = $region21
    $region20: #{tpu_custom_call.1} parent=1 // pred_region
      %50 = dma.done [#allocation6], 64
    $region21: #{tpu_custom_call.1} parent=1 // pred_fallthru
      _
    // Predicated region
    $region22: #{tpu_custom_call.1} parent=1 // pred_check
      _
    $region23: #{tpu_custom_call.1} parent=1 // pred_check_branch
      %52 = sbr.rel (0) target = $region25
    $region24: #{tpu_custom_call.1} parent=1 // pred_region
      %53 = dma.done [#allocation6], 512
    $region25: #{tpu_custom_call.1} parent=1 // pred_fallthru
      _
    %v54 = vld [vmem:[#allocation5] sm:$0xf]
    %v55 = vld [vmem:[#allocation7] sm:$0xff]
    %v56 = vld [vmem:[#allocation7 + $0x8] sm:$0xff]
    %v57 = vld [vmem:[#allocation7 + $0x10] sm:$0x1]
    %v58 = vld [vmem:[#allocation7 + $0x18] sm:$0x1]
    %v59 = vld [vmem:[#allocation2] sm:$0xff]
    %v61 = vcombine.high %v59, %v59
    %63 = vrot.lane.b32.xlu0 %v59, 17
    %v64 = vpop.permute.xlu0 %63
    %65 = vrot.lane.b32.xlu0 %v61, 17
    %v66 = vpop.permute.xlu0 %65
    %v67 = vlaneseq
    %v68 = vand.u32 %v67, 127
    %vm69 = vcmp.lt.s32.totalorder %v68, 17
    %v70 = vsel %vm69, %v64, %v66
    %v71 = vsel %vm69, %v66, %v64
    %v72 = vlaneseq
    %v73 = vshrl.u32 %v72, 7
    %v74 = vsub.s32 0, %v73
    %v75 = vrot.slane %v55, %v74
    %v76 = vlaneseq
    %v77 = vshrl.u32 %v76, 7
    %v78 = vsub.s32 0, %v77
    %v79 = vrot.slane %v56, %v78
    %v80 = vmul.f32 %v71, %v75
    %v81 = vmul.f32 %v70, %v79
    %82 = vrot.lane.b32.xlu0 %v59, 16
    %v83 = vpop.permute.xlu0 %82
    %84 = vrot.lane.b32.xlu0 %v61, 16
    %v85 = vpop.permute.xlu0 %84
    %vm86 = vcmp.lt.s32.totalorder %v68, 16
    %v87 = vsel %vm86, %v83, %v85
    %v88 = vsel %vm86, %v85, %v83
    %v89 = vlaneseq
    %v90 = vshrl.u32 %v89, 7
    %v91 = vsub.s32 1, %v90
    %v92 = vrot.slane %v55, %v91
    %v93 = vlaneseq
    %v94 = vshrl.u32 %v93, 7
    %v95 = vsub.s32 1, %v94
    %v96 = vrot.slane %v56, %v95
    %v97 = vmul.f32 %v88, %v92
    %v98 = vmul.f32 %v87, %v96
    %99 = vrot.lane.b32.xlu0 %v59, 15
    %v100 = vpop.permute.xlu0 %99
    %101 = vrot.lane.b32.xlu0 %v61, 15
    %v102 = vpop.permute.xlu0 %101
    %vm103 = vcmp.lt.s32.totalorder %v68, 15
    %v104 = vsel %vm103, %v100, %v102
    %v105 = vsel %vm103, %v102, %v100
    %v106 = vlaneseq
    %v107 = vshrl.u32 %v106, 7
    %v108 = vsub.s32 2, %v107
    %v109 = vrot.slane %v55, %v108
    %v110 = vlaneseq
    %v111 = vshrl.u32 %v110, 7
    %v112 = vsub.s32 2, %v111
    %v113 = vrot.slane %v56, %v112
    %v114 = vmul.f32 %v105, %v109
    %v115 = vmul.f32 %v104, %v113
    %116 = vrot.lane.b32.xlu0 %v59, 1
    %v117 = vpop.permute.xlu0 %116
    %118 = vrot.lane.b32.xlu0 %v61, 1
    %v119 = vpop.permute.xlu0 %118
    %vm120 = vcmp.lt.s32.totalorder %v68, 1
    %v121 = vsel %vm120, %v117, %v119
    %v122 = vsel %vm120, %v119, %v117
    %v123 = vlaneseq
    %v124 = vshrl.u32 %v123, 7
    %v125 = vsub.s32 3, %v124
    %v126 = vrot.slane %v55, %v125
    %v127 = vlaneseq
    %v128 = vshrl.u32 %v127, 7
    %v129 = vsub.s32 3, %v128
    %v130 = vrot.slane %v56, %v129
    %v131 = vmul.f32 %v122, %v126
    %v132 = vmul.f32 %v121, %v130
    %133 = vrot.lane.b32.xlu0 %v59, 127
    %v134 = vpop.permute.xlu0 %133
    %135 = vrot.lane.b32.xlu0 %v61, 127
    %v136 = vpop.permute.xlu0 %135
    %vm137 = vcmp.lt.s32.totalorder %v68, 127
    %v138 = vsel %vm137, %v134, %v136
    %v139 = vsel %vm137, %v136, %v134
    %v140 = vlaneseq
    %v141 = vshrl.u32 %v140, 7
    %v142 = vsub.s32 5, %v141
    %v143 = vrot.slane %v55, %v142
    %v144 = vlaneseq
    %v145 = vshrl.u32 %v144, 7
    %v146 = vsub.s32 5, %v145
    %v147 = vrot.slane %v56, %v146
    %v148 = vmul.f32 %v138, %v143
    %v149 = vmul.f32 %v139, %v147
    %150 = vrot.lane.b32.xlu0 %v59, 113
    %v151 = vpop.permute.xlu0 %150
    %152 = vrot.lane.b32.xlu0 %v61, 113
    %v153 = vpop.permute.xlu0 %152
    %vm154 = vcmp.lt.s32.totalorder %v68, 113
    %v155 = vsel %vm154, %v151, %v153
    %v156 = vsel %vm154, %v153, %v151
    %v157 = vlaneseq
    %v158 = vshrl.u32 %v157, 7
    %v159 = vsub.s32 6, %v158
    %v160 = vrot.slane %v55, %v159
    %v161 = vlaneseq
    %v162 = vshrl.u32 %v161, 7
    %v163 = vsub.s32 6, %v162
    %v164 = vrot.slane %v56, %v163
    %v165 = vmul.f32 %v155, %v160
    %v166 = vmul.f32 %v156, %v164
    %167 = vrot.lane.b32.xlu0 %v59, 112
    %v168 = vpop.permute.xlu0 %167
    %169 = vrot.lane.b32.xlu0 %v61, 112
    %v170 = vpop.permute.xlu0 %169
    %vm171 = vcmp.lt.s32.totalorder %v68, 112
    %v172 = vsel %vm171, %v168, %v170
    %v173 = vsel %vm171, %v170, %v168
    %v174 = vlaneseq
    %v175 = vshrl.u32 %v174, 7
    %v176 = vsub.s32 7, %v175
    %v177 = vrot.slane %v55, %v176
    %v178 = vlaneseq
    %v179 = vshrl.u32 %v178, 7
    %v180 = vsub.s32 7, %v179
    %v181 = vrot.slane %v56, %v180
    %v182 = vmul.f32 %v172, %v177
    %v183 = vmul.f32 %v173, %v181
    %184 = vrot.lane.b32.xlu0 %v59, 111
    %v185 = vpop.permute.xlu0 %184
    %186 = vrot.lane.b32.xlu0 %v61, 111
    %v187 = vpop.permute.xlu0 %186
    %vm188 = vcmp.lt.s32.totalorder %v68, 111
    %v189 = vsel %vm188, %v185, %v187
    %v190 = vsel %vm188, %v187, %v185
    %v191 = vlaneseq
    %v192 = vshrl.u32 %v191, 7
    %v193 = vsub.s32 0, %v192
    %v194 = vrot.slane %v57, %v193
    %v195 = vlaneseq
    %v196 = vshrl.u32 %v195, 7
    %v197 = vsub.s32 0, %v196
    %v198 = vrot.slane %v58, %v197
    %v199 = vmul.f32 %v189, %v194
    %v200 = vmul.f32 %v190, %v198
    %v203 = vrot.slane %v97, 4
    %v204 = vrot.slane %v98, 4
    %v209 = vrot.slane %v131, 4
    %v210 = vrot.slane %v132, 4
    %v215 = vrot.slane %v148, 4
    %v216 = vrot.slane %v149, 4
    %v221 = vrot.slane %v182, 4
    %v222 = vrot.slane %v183, 4
    %vm225 = vcmask 1043456
    %v226 = vsel %vm225, %v80, %v203
    %v227 = vsel %vm225, %v81, %v204
    %v228 = vsel %vm225, %v114, %v209
    %v229 = vsel %vm225, %v115, %v210
    %v230 = vsel %vm225, %v59, %v215
    %v231 = vsel %vm225, %v61, %v216
    %v232 = vsel %vm225, %v165, %v221
    %v233 = vsel %vm225, %v166, %v222
    %v234 = vsel %vm225, %v199, 1.0
    %v235 = vsel %vm225, %v200, 1.0
    %vm236 = vcmask 302080
    %v238 = vsel %vm236, %v54, 0
    %vm240 = vcmask 1044480
    %v242 = vsel %vm240, %v234, 0
    %v245 = vsel %vm240, %v235, 0
    %247 = vmatprep.subr.mxu0 %v227
    %248 = vmatpush1.msra.mxu0 %v226
    %249 = vmatprep.subr.mxu0 %v229
    %250 = vmatpush1.msra.mxu0 %v228
    %251 = vmatprep.subr.mxu0 %v231
    %252 = vmatpush1.msra.mxu0 %v230
    %253 = vmatprep.subr.mxu0 %v233
    %254 = vmatpush1.msra.mxu0 %v232
    %255 = vmatprep.subr.mxu0 %v245
    %256 = vmatpush1.msra.mxu0 %v242
    %257 = vmatprep.subr.mxu0 0.0
    %258 = vmatpush1.msra.mxu0 0.0
    %259 = vmatprep.subr.mxu0 0.0
    %260 = vmatpush1.msra.mxu0 0.0
    %261 = vmatprep.subr.mxu0 0.0
    %262 = vmatpush1.msra.mxu0 0.0
    %263 = vmatprep.subr.mxu0 0.0
    %264 = vmatpush1.msra.mxu0 0.0
    %265 = vmatprep.subr.mxu0 0.0
    %266 = vmatpush1.msra.mxu0 0.0
    %267 = vmatprep.subr.mxu0 0.0
    %268 = vmatpush1.msra.mxu0 0.0
    %269 = vmatprep.subr.mxu0 0.0
    %270 = vmatpush1.msra.mxu0 0.0
    %271 = vmatprep.subr.mxu0 0.0
    %272 = vmatpush1.msra.mxu0 0.0
    %273 = vmatprep.subr.mxu0 0.0
    %274 = vmatpush1.msra.mxu0 0.0
    %275 = vmatprep.subr.mxu0 0.0
    %276 = vmatpush1.msra.mxu0 0.0
    %277 = vmatprep.subr.mxu0 0.0
    %278 = vmatpush1.msra.mxu0 0.0
    %279 = vmatprep.subr.mxu0 0.0
    %280 = vmatpush1.msra.mxu0 0.0
    %281 = vmatprep.subr.mxu0 0.0
    %282 = vmatpush1.msra.mxu0 0.0
    %283 = vmatprep.subr.mxu0 0.0
    %284 = vmatpush1.msra.mxu0 0.0
    %285 = vmatprep.subr.mxu0 0.0
    %286 = vmatpush1.msra.mxu0 0.0
    %287 = vmatprep.subr.mxu0 0.0
    %288 = vmatpush1.msra.mxu0 0.0
    %289 = vmatprep.subr.mxu0 0.0
    %290 = vmatpush1.msra.mxu0 0.0
    %291 = vmatprep.subr.mxu0 0.0
    %292 = vmatpush1.msra.mxu0 0.0
    %293 = vmatprep.subr.mxu0 0.0
    %294 = vmatpush1.msra.mxu0 0.0
    %295 = vmatprep.subr.mxu0 0.0
    %296 = vmatpush1.msra.mxu0 0.0
    %297 = vmatprep.subr.mxu0 0.0
    %298 = vmatpush1.msra.mxu0 0.0
    %299 = vmatprep.subr.mxu0 0.0
    %300 = vmatpush1.msra.mxu0 0.0
    %301 = vmatprep.subr.mxu0 0.0
    %302 = vmatpush1.msra.mxu0 0.0
    %303 = vmatprep.subr.mxu0 0.0
    %304 = vmatpush1.msra.mxu0 0.0
    %305 = vmatprep.subr.mxu0 0.0
    %306 = vmatpush1.msra.mxu0 0.0
    %307 = vmatprep.subr.mxu0 0.0
    %308 = vmatpush1.msra.mxu0 0.0
    %309 = vmatprep.subr.mxu0 0.0
    %310 = vmatpush1.msra.mxu0 0.0
    %311 = vmatprep.mubr.f32.mxu0 0.0
    %312 = vmatmul.mubr.f32.gmra.mrb[0].mxu0 %v238
    %v313 = vpop.f32.mrb[0].mxu0
    %v314 = vadd.f32 0.0, %v313
    %v315 = vpop.f32.mrb[0].mxu0
    %v316 = vadd.f32 0.0, %v315
    %317 = vdwg.mxu0
    %v318 = vmax.f32 %v314, 0.0
    %v319 = vmax.f32 %v316, 0.0
    %v322 = vcombine.low %v318, %v319
    %324 = vst [vmem:[#allocation8] sm:$0xff] %v322
    %s325 = scalar_lea.vmem [#allocation2], 8
    %v326 = vld [vmem:[%s325] sm:$0xff]
    %v328 = vcombine.high %v326, %v326
    %330 = vrot.lane.b32.xlu0 %v326, 17
    %v331 = vpop.permute.xlu0 %330
    %332 = vrot.lane.b32.xlu0 %v328, 17
    %v333 = vpop.permute.xlu0 %332
    %v334 = vsel %vm69, %v331, %v333
    %v335 = vsel %vm69, %v333, %v331
    %v336 = vmul.f32 %v335, %v75
    %v337 = vmul.f32 %v334, %v79
    %338 = vrot.lane.b32.xlu0 %v326, 16
    %v339 = vpop.permute.xlu0 %338
    %340 = vrot.lane.b32.xlu0 %v328, 16
    %v341 = vpop.permute.xlu0 %340
    %v342 = vsel %vm86, %v339, %v341
    %v343 = vsel %vm86, %v341, %v339
    %v344 = vmul.f32 %v343, %v92
    %v345 = vmul.f32 %v342, %v96
    %346 = vrot.lane.b32.xlu0 %v326, 15
    %v347 = vpop.permute.xlu0 %346
    %348 = vrot.lane.b32.xlu0 %v328, 15
    %v349 = vpop.permute.xlu0 %348
    %v350 = vsel %vm103, %v347, %v349
    %v351 = vsel %vm103, %v349, %v347
    %v352 = vmul.f32 %v351, %v109
    %v353 = vmul.f32 %v350, %v113
    %354 = vrot.lane.b32.xlu0 %v326, 1
    %v355 = vpop.permute.xlu0 %354
    %356 = vrot.lane.b32.xlu0 %v328, 1
    %v357 = vpop.permute.xlu0 %356
    %v358 = vsel %vm120, %v355, %v357
    %v359 = vsel %vm120, %v357, %v355
    %v360 = vmul.f32 %v359, %v126
    %v361 = vmul.f32 %v358, %v130
    %362 = vrot.lane.b32.xlu0 %v326, 127
    %v363 = vpop.permute.xlu0 %362
    %364 = vrot.lane.b32.xlu0 %v328, 127
    %v365 = vpop.permute.xlu0 %364
    %v366 = vsel %vm137, %v363, %v365
    %v367 = vsel %vm137, %v365, %v363
    %v368 = vmul.f32 %v366, %v143
    %v369 = vmul.f32 %v367, %v147
    %370 = vrot.lane.b32.xlu0 %v326, 113
    %v371 = vpop.permute.xlu0 %370
    %372 = vrot.lane.b32.xlu0 %v328, 113
    %v373 = vpop.permute.xlu0 %372
    %v374 = vsel %vm154, %v371, %v373
    %v375 = vsel %vm154, %v373, %v371
    %v376 = vmul.f32 %v374, %v160
    %v377 = vmul.f32 %v375, %v164
    %378 = vrot.lane.b32.xlu0 %v326, 112
    %v379 = vpop.permute.xlu0 %378
    %380 = vrot.lane.b32.xlu0 %v328, 112
    %v381 = vpop.permute.xlu0 %380
    %v382 = vsel %vm171, %v379, %v381
    %v383 = vsel %vm171, %v381, %v379
    %v384 = vmul.f32 %v382, %v177
    %v385 = vmul.f32 %v383, %v181
    %386 = vrot.lane.b32.xlu0 %v326, 111
    %v387 = vpop.permute.xlu0 %386
    %388 = vrot.lane.b32.xlu0 %v328, 111
    %v389 = vpop.permute.xlu0 %388
    %v390 = vsel %vm188, %v387, %v389
    %v391 = vsel %vm188, %v389, %v387
    %v392 = vmul.f32 %v390, %v194
    %v393 = vmul.f32 %v391, %v198
    %v396 = vrot.slane %v344, 4
    %v397 = vrot.slane %v345, 4
    %v402 = vrot.slane %v360, 4
    %v403 = vrot.slane %v361, 4
    %v408 = vrot.slane %v368, 4
    %v409 = vrot.slane %v369, 4
    %v414 = vrot.slane %v384, 4
    %v415 = vrot.slane %v385, 4
    %v418 = vsel %vm225, %v336, %v396
    %v419 = vsel %vm225, %v337, %v397
    %v420 = vsel %vm225, %v352, %v402
    %v421 = vsel %vm225, %v353, %v403
    %v422 = vsel %vm225, %v326, %v408
    %v423 = vsel %vm225, %v328, %v409
    %v424 = vsel %vm225, %v376, %v414
    %v425 = vsel %vm225, %v377, %v415
    %v426 = vsel %vm225, %v392, 1.0
    %v427 = vsel %vm225, %v393, 1.0
    %v429 = vsel %vm240, %v426, 0
    %v432 = vsel %vm240, %v427, 0
    %434 = vmatprep.subr.mxu0 %v419
    %435 = vmatpush1.msra.mxu0 %v418
    %436 = vmatprep.subr.mxu0 %v421
    %437 = vmatpush1.msra.mxu0 %v420
    %438 = vmatprep.subr.mxu0 %v423
    %439 = vmatpush1.msra.mxu0 %v422
    %440 = vmatprep.subr.mxu0 %v425
    %441 = vmatpush1.msra.mxu0 %v424
    %442 = vmatprep.subr.mxu0 %v432
    %443 = vmatpush1.msra.mxu0 %v429
    %444 = vmatprep.subr.mxu0 0.0
    %445 = vmatpush1.msra.mxu0 0.0
    %446 = vmatprep.subr.mxu0 0.0
    %447 = vmatpush1.msra.mxu0 0.0
    %448 = vmatprep.subr.mxu0 0.0
    %449 = vmatpush1.msra.mxu0 0.0
    %450 = vmatprep.subr.mxu0 0.0
    %451 = vmatpush1.msra.mxu0 0.0
    %452 = vmatprep.subr.mxu0 0.0
    %453 = vmatpush1.msra.mxu0 0.0
    %454 = vmatprep.subr.mxu0 0.0
    %455 = vmatpush1.msra.mxu0 0.0
    %456 = vmatprep.subr.mxu0 0.0
    %457 = vmatpush1.msra.mxu0 0.0
    %458 = vmatprep.subr.mxu0 0.0
    %459 = vmatpush1.msra.mxu0 0.0
    %460 = vmatprep.subr.mxu0 0.0
    %461 = vmatpush1.msra.mxu0 0.0
    %462 = vmatprep.subr.mxu0 0.0
    %463 = vmatpush1.msra.mxu0 0.0
    %464 = vmatprep.subr.mxu0 0.0
    %465 = vmatpush1.msra.mxu0 0.0
    %466 = vmatprep.subr.mxu0 0.0
    %467 = vmatpush1.msra.mxu0 0.0
    %468 = vmatprep.subr.mxu0 0.0
    %469 = vmatpush1.msra.mxu0 0.0
    %470 = vmatprep.subr.mxu0 0.0
    %471 = vmatpush1.msra.mxu0 0.0
    %472 = vmatprep.subr.mxu0 0.0
    %473 = vmatpush1.msra.mxu0 0.0
    %474 = vmatprep.subr.mxu0 0.0
    %475 = vmatpush1.msra.mxu0 0.0
    %476 = vmatprep.subr.mxu0 0.0
    %477 = vmatpush1.msra.mxu0 0.0
    %478 = vmatprep.subr.mxu0 0.0
    %479 = vmatpush1.msra.mxu0 0.0
    %480 = vmatprep.subr.mxu0 0.0
    %481 = vmatpush1.msra.mxu0 0.0
    %482 = vmatprep.subr.mxu0 0.0
    %483 = vmatpush1.msra.mxu0 0.0
    %484 = vmatprep.subr.mxu0 0.0
    %485 = vmatpush1.msra.mxu0 0.0
    %486 = vmatprep.subr.mxu0 0.0
    %487 = vmatpush1.msra.mxu0 0.0
    %488 = vmatprep.subr.mxu0 0.0
    %489 = vmatpush1.msra.mxu0 0.0
    %490 = vmatprep.subr.mxu0 0.0
    %491 = vmatpush1.msra.mxu0 0.0
    %492 = vmatprep.subr.mxu0 0.0
    %493 = vmatpush1.msra.mxu0 0.0
    %494 = vmatprep.subr.mxu0 0.0
    %495 = vmatpush1.msra.mxu0 0.0
    %496 = vmatprep.subr.mxu0 0.0
    %497 = vmatpush1.msra.mxu0 0.0
    %498 = vmatprep.mubr.f32.mxu0 0.0
    %499 = vmatmul.mubr.f32.gmra.mrb[0].mxu0 %v238
    %v500 = vpop.f32.mrb[0].mxu0
    %v501 = vadd.f32 0.0, %v500
    %v502 = vpop.f32.mrb[0].mxu0
    %v503 = vadd.f32 0.0, %v502
    %504 = vdwg.mxu0
    %v505 = vmax.f32 %v501, 0.0
    %v506 = vmax.f32 %v503, 0.0
    %v509 = vcombine.low %v505, %v506
    %s511 = scalar_lea.vmem [#allocation8], 8
    %512 = vst [vmem:[%s511] sm:$0xff] %v509
    // Predicated region
    $region26: #{tpu_custom_call.1} parent=1 // pred_check
      _
    $region27: #{tpu_custom_call.1} parent=1 // pred_check_branch
      %514 = sbr.rel (0) target = $region29
    $region28: #{tpu_custom_call.1} parent=1 // pred_region
      %s516 = ssub.s32 256, 256
      %517 = vsyncadd [#allocation4], %s516
      %s518 = sshll.u32 [#allocation8], 4
      %s519 = int_to_ptr.vmem [resolvable:$true] %s518
      %524 = dma.vmem_to_hbm [thread:$0]  %s519, 256, %s3, [#allocation4], 128, 128, 8
    $region29: #{tpu_custom_call.1} parent=1 // pred_fallthru
      _
    // Predicated region
    $region30: #{tpu_custom_call.1} parent=1 // pred_check
      _
    $region31: #{tpu_custom_call.1} parent=1 // pred_check_branch
      %526 = sbr.rel (0) target = $region33
    $region32: #{tpu_custom_call.1} parent=1 // pred_region
      %527 = dma.done [#allocation4], 256
    $region33: #{tpu_custom_call.1} parent=1 // pred_fallthru
      _
    %528 = vsyncpa [#allocation3], 1
    %529 = vsyncpa [#allocation6], 1
    %530 = vsyncpa [#allocation4], 1

</llo_original>
